<compile_context>
chip_gen: v5e
topology: v5e:2x2
jax: 0.10.0
libtpu: 0.0.40
codegen_flags: <defaults>
</compile_context>

<pallas_src>
import functools

import numpy as np

import jax
import jax.numpy as jnp
from jax import lax
from jax.experimental import pallas as pl
from jax.experimental.pallas import tpu as pltpu


def _full_sum(a):
    """Sum a 2-D array to shape (1, 1): lane-reduce then sublane-reduce."""
    return jnp.sum(jnp.sum(a, axis=1, keepdims=True), axis=0, keepdims=True)


def _conv_bn_relu_kernel(xrep_ref, mask_ref, wcol_ref, gamma_ref, beta_ref, out_ref, *,
                         N, H, W, Cin, Cout, KH, KW, R, eps):
    """3x3 conv (packed VPU FMAs over rolled slabs) + training-mode BN + ReLU.

    xrep_ref : (Cin*R, HW) f32 VMEM  input replicated over co: row ci*R + co*N + n = x[n, ci]
    mask_ref : (KH*KW, HW) f32 VMEM  per-tap zero-padding boundary masks (constant)
    wcol_ref : (R, KH*KW*Cin) f32 VMEM  weight columns: [co*N+n, t*Cin+ci] = w[co, ci, dy, dx]
    gamma_ref: (Cout,) f32 SMEM
    beta_ref : (Cout,) f32 SMEM
    out_ref  : (R, HW) f32 VMEM  packed output, rows co*N + n (pad rows zero)
    """
    HW = H * W
    half_h, half_w = KH // 2, KW // 2

    xrep = xrep_ref[...]                                    # (Cin*R, HW)

    # Column(dj)-shifted slabs, built once (single-lane shifts).
    col_slab = {0: xrep}
    for dj in range(-half_w, half_w + 1):
        if dj != 0:
            col_slab[dj] = pltpu.roll(xrep, shift=(-dj) % HW, axis=1)

    acc = jnp.zeros((R, HW), jnp.float32)
    for dy in range(KH):
        di = dy - half_h
        for dx in range(KW):
            dj = dx - half_w
            t = dy * KW + dx

            # Row shift = +-W lane roll of the already column-shifted slab (16 | 128).
            sh = col_slab[dj]
            if di != 0:
                sh = pltpu.roll(sh, shift=(-di * W) % HW, axis=1)
            # Zero-padding halo: one precomputed f32 mask multiply (broadcast over sublanes).
            # Circular wrap positions are exactly the masked positions, so wrap is harmless.
            if di != 0 or dj != 0:
                sh = sh * mask_ref[t:t + 1, :]

            # Packed FMA: per input channel, one column-broadcast mul+add on the (R, HW) block
            # that already carries all (co, n) rows (tile-aligned slice: R is a multiple of 8).
            for ci in range(Cin):
                c0 = t * Cin + ci
                wc = wcol_ref[:, c0:c0 + 1]                 # (R, 1) per-co weights
                acc = acc + wc * sh[ci * R:(ci + 1) * R, :]

    # BatchNorm (training-mode stats over (N, H, W), biased variance) folded into per-row
    # scale/shift columns, then one fused FMA + ReLU + full-slab store.
    inv_cnt = 1.0 / float(N * HW)
    row_id = lax.broadcasted_iota(jnp.int32, (R, 1), 0)
    scale = jnp.zeros((R, 1), jnp.float32)
    shift = jnp.zeros((R, 1), jnp.float32)
    for co in range(Cout):
        ch = jnp.logical_and(row_id >= co * N, row_id < (co + 1) * N)    # (R, 1) channel rows
        yc = jnp.where(ch, acc, 0.0)
        mean = _full_sum(yc) * inv_cnt                                   # (1, 1)
        cyc = jnp.where(ch, acc - mean, 0.0)
        var = _full_sum(cyc * cyc) * inv_cnt                             # biased (PyTorch training)
        sc = lax.rsqrt(var + eps) * gamma_ref[co]                        # EUP rsqrt, SMEM gamma
        sf = beta_ref[co] - mean * sc
        scale = jnp.where(ch, sc, scale)
        shift = jnp.where(ch, sf, shift)

    out_ref[...] = jnp.maximum(acc * scale + shift, 0.0).astype(out_ref.dtype)


def conv_n_forward(x_nchw, weight_oihw, gamma, beta, eps=1e-5):
    """NCHW in / NCHW out, matching PyTorch Conv_N.forward (fresh module, training-mode BN)."""
    N, Cin, H, W = x_nchw.shape
    Cout, Cin_w, KH, KW = weight_oihw.shape
    assert Cin == Cin_w
    HW = H * W
    # Sublane-pad the packed (co, n) row dimension to a full 8-row vreg tile so every per-channel
    # block slice and the final store are tile-aligned.
    R = ((Cout * N + 7) // 8) * 8

    xf = x_nchw.astype(jnp.float32)

    # Input, packed + replicated over output channels (wrapper-side layout plumbing only):
    #   x_rep[ci*R + co*N + n, p] = x[n, ci, p]   (independent of co; rows >= Cout*N are zero).
    x_cn = jnp.transpose(xf, (1, 0, 2, 3)).reshape(Cin, N, HW)
    x_rep = jnp.broadcast_to(x_cn[:, None, :, :], (Cin, Cout, N, HW)).reshape(Cin, Cout * N, HW)
    if R != Cout * N:
        x_rep = jnp.concatenate(
            [x_rep, jnp.zeros((Cin, R - Cout * N, HW), jnp.float32)], axis=1)
    x_rep = x_rep.reshape(Cin * R, HW)

    # Weight columns: wcols[co*N + n, (dy*KW+dx)*Cin + ci] = w[co, ci, dy, dx]; pad rows zero.
    w = weight_oihw.astype(jnp.float32)
    wcols = jnp.transpose(w, (0, 2, 3, 1)).reshape(Cout, KH * KW * Cin)
    wcols = jnp.repeat(wcols, N, axis=0)
    if R != Cout * N:
        wcols = jnp.concatenate(
            [wcols, jnp.zeros((R - Cout * N, KH * KW * Cin), jnp.float32)], axis=0)

    # Compile-time constant zero-padding boundary masks, one f32 row per tap.
    rr = np.repeat(np.arange(H), W)
    cc = np.tile(np.arange(W), H)
    masks = np.zeros((KH * KW, HW), np.float32)
    for dy in range(KH):
        for dx in range(KW):
            di, dj = dy - KH // 2, dx - KW // 2
            ok = (rr + di >= 0) & (rr + di < H) & (cc + dj >= 0) & (cc + dj < W)
            masks[dy * KW + dx] = ok.astype(np.float32)
    masks = jnp.asarray(masks)

    kernel = functools.partial(
        _conv_bn_relu_kernel,
        N=N, H=H, W=W, Cin=Cin, Cout=Cout, KH=KH, KW=KW, R=R, eps=float(eps))

    out_packed = pl.pallas_call(
        kernel,
        out_shape=jax.ShapeDtypeStruct((R, HW), jnp.float32),
        in_specs=[
            pl.BlockSpec(memory_space=pltpu.MemorySpace.VMEM),   # x_rep
            pl.BlockSpec(memory_space=pltpu.MemorySpace.VMEM),   # boundary masks
            pl.BlockSpec(memory_space=pltpu.MemorySpace.VMEM),   # weight columns
            pl.BlockSpec(memory_space=pltpu.MemorySpace.SMEM),   # gamma
            pl.BlockSpec(memory_space=pltpu.MemorySpace.SMEM),   # beta
        ],
        out_specs=pl.BlockSpec(memory_space=pltpu.MemorySpace.VMEM),
    )(x_rep, masks, wcols, gamma.astype(jnp.float32), beta.astype(jnp.float32))

    out = out_packed[:Cout * N].reshape(Cout, N, H, W)
    return jnp.transpose(out, (1, 0, 2, 3)).astype(x_nchw.dtype)


def _reference(x_nchw, weight_oihw, gamma, beta, eps=1e-5):
    """Pure-JAX reference (lax conv + training-mode BN + ReLU)."""
    y = lax.conv_general_dilated(
        x_nchw, weight_oihw, window_strides=(1, 1), padding=((1, 1), (1, 1)),
        dimension_numbers=("NCHW", "OIHW", "NCHW"))
    mean = jnp.mean(y, axis=(0, 2, 3), keepdims=True)
    var = jnp.mean((y - mean) ** 2, axis=(0, 2, 3), keepdims=True)
    y = (y - mean) * lax.rsqrt(var + eps)
    y = y * gamma.reshape(1, -1, 1, 1) + beta.reshape(1, -1, 1, 1)
    return jnp.maximum(y, 0.0)


if __name__ == "__main__":
    key = jax.random.PRNGKey(0)
    k_x, k_w, k_g, k_b = jax.random.split(key, 4)

    N, C, H, W = 2, 3, 16, 16            # module fixes Cin = Cout = 3
    x = jax.random.normal(k_x, (N, C, H, W), dtype=jnp.float32)

    # Conv weight init like Conv_N._init_weight: normal(0, sqrt(2 / (k*k*out_ch)))
    fan = 3 * 3 * 3
    weight = jax.random.normal(k_w, (3, 3, 3, 3), dtype=jnp.float32) * jnp.sqrt(2.0 / fan)
    # BN affine params (perturbed so the affine path is actually exercised)
    gamma = 1.0 + 0.1 * jax.random.normal(k_g, (3,), dtype=jnp.float32)
    beta = 0.1 * jax.random.normal(k_b, (3,), dtype=jnp.float32)

    out = jax.block_until_ready(conv_n_forward(x, weight, gamma, beta))
    ref = jax.block_until_ready(_reference(x, weight, gamma, beta))

    assert out.shape == (N, 3, H, W), out.shape
    assert jnp.allclose(out, ref, atol=1e-4, rtol=1e-4), float(jnp.max(jnp.abs(out - ref)))
    print("KERNEL_OK")
</pallas_src>

<mosaic_0001>
module attributes {stable_mosaic.version = 11 : i64} {
  func.func @_conv_bn_relu_kernel(%arg0: memref<24x256xf32, #tpu.memory_space<vmem>>, %arg1: memref<9x256xf32, #tpu.memory_space<vmem>>, %arg2: memref<8x27xf32, #tpu.memory_space<vmem>>, %arg3: memref<3xf32, #tpu.memory_space<smem>>, %arg4: memref<3xf32, #tpu.memory_space<smem>>, %arg5: memref<8x256xf32, #tpu.memory_space<vmem>>) attributes {dimension_semantics = [], scalar_prefetch = 0 : i64, scratch_operands = 0 : i64, tpu.core_type = #tpu.core_type<tc>} {
    %c0 = arith.constant 0 : index
    %c0_0 = arith.constant 0 : index
    %0 = vector.load %arg0[%c0, %c0_0] : memref<24x256xf32, #tpu.memory_space<vmem>>, vector<24x256xf32>
    %c1_i32 = arith.constant 1 : i32
    %1 = tpu.dynamic_rotate %0 by %c1_i32 dim 1 : vector<24x256xf32>, i32 -> vector<24x256xf32>
    %c255_i32 = arith.constant 255 : i32
    %2 = tpu.dynamic_rotate %0 by %c255_i32 dim 1 : vector<24x256xf32>, i32 -> vector<24x256xf32>
    %cst = arith.constant 0.000000e+00 : f32
    %3 = vector.broadcast %cst : f32 to vector<8x256xf32>
    %c16_i32 = arith.constant 16 : i32
    %4 = tpu.dynamic_rotate %1 by %c16_i32 dim 1 : vector<24x256xf32>, i32 -> vector<24x256xf32>
    %c0_1 = arith.constant 0 : index
    %c0_2 = arith.constant 0 : index
    %5 = vector.load %arg1[%c0_1, %c0_2] : memref<9x256xf32, #tpu.memory_space<vmem>>, vector<1x256xf32>
    %6 = vector.broadcast %5 : vector<1x256xf32> to vector<24x256xf32>
    %7 = arith.mulf %4, %6 : vector<24x256xf32>
    %c0_3 = arith.constant 0 : index
    %c0_4 = arith.constant 0 : index
    %8 = vector.load %arg2[%c0_3, %c0_4] : memref<8x27xf32, #tpu.memory_space<vmem>>, vector<8x1xf32>
    %9 = vector.extract_strided_slice %7 {offsets = [0, 0], sizes = [8, 256], strides = [1, 1]} : vector<24x256xf32> to vector<8x256xf32>
    %10 = vector.broadcast %8 : vector<8x1xf32> to vector<8x256xf32>
    %11 = arith.mulf %10, %9 : vector<8x256xf32>
    %12 = arith.addf %3, %11 : vector<8x256xf32>
    %c0_5 = arith.constant 0 : index
    %c1 = arith.constant 1 : index
    %13 = vector.load %arg2[%c0_5, %c1] : memref<8x27xf32, #tpu.memory_space<vmem>>, vector<8x1xf32>
    %14 = vector.extract_strided_slice %7 {offsets = [8, 0], sizes = [8, 256], strides = [1, 1]} : vector<24x256xf32> to vector<8x256xf32>
    %15 = vector.broadcast %13 : vector<8x1xf32> to vector<8x256xf32>
    %16 = arith.mulf %15, %14 : vector<8x256xf32>
    %17 = arith.addf %12, %16 : vector<8x256xf32>
    %c0_6 = arith.constant 0 : index
    %c2 = arith.constant 2 : index
    %18 = vector.load %arg2[%c0_6, %c2] : memref<8x27xf32, #tpu.memory_space<vmem>>, vector<8x1xf32>
    %19 = vector.extract_strided_slice %7 {offsets = [16, 0], sizes = [8, 256], strides = [1, 1]} : vector<24x256xf32> to vector<8x256xf32>
    %20 = vector.broadcast %18 : vector<8x1xf32> to vector<8x256xf32>
    %21 = arith.mulf %20, %19 : vector<8x256xf32>
    %22 = arith.addf %17, %21 : vector<8x256xf32>
    %c16_i32_7 = arith.constant 16 : i32
    %23 = tpu.dynamic_rotate %0 by %c16_i32_7 dim 1 : vector<24x256xf32>, i32 -> vector<24x256xf32>
    %c1_8 = arith.constant 1 : index
    %c0_9 = arith.constant 0 : index
    %24 = vector.load %arg1[%c1_8, %c0_9] : memref<9x256xf32, #tpu.memory_space<vmem>>, vector<1x256xf32>
    %25 = vector.broadcast %24 : vector<1x256xf32> to vector<24x256xf32>
    %26 = arith.mulf %23, %25 : vector<24x256xf32>
    %c0_10 = arith.constant 0 : index
    %c3 = arith.constant 3 : index
    %27 = vector.load %arg2[%c0_10, %c3] : memref<8x27xf32, #tpu.memory_space<vmem>>, vector<8x1xf32>
    %28 = vector.extract_strided_slice %26 {offsets = [0, 0], sizes = [8, 256], strides = [1, 1]} : vector<24x256xf32> to vector<8x256xf32>
    %29 = vector.broadcast %27 : vector<8x1xf32> to vector<8x256xf32>
    %30 = arith.mulf %29, %28 : vector<8x256xf32>
    %31 = arith.addf %22, %30 : vector<8x256xf32>
    %c0_11 = arith.constant 0 : index
    %c4 = arith.constant 4 : index
    %32 = vector.load %arg2[%c0_11, %c4] : memref<8x27xf32, #tpu.memory_space<vmem>>, vector<8x1xf32>
    %33 = vector.extract_strided_slice %26 {offsets = [8, 0], sizes = [8, 256], strides = [1, 1]} : vector<24x256xf32> to vector<8x256xf32>
    %34 = vector.broadcast %32 : vector<8x1xf32> to vector<8x256xf32>
    %35 = arith.mulf %34, %33 : vector<8x256xf32>
    %36 = arith.addf %31, %35 : vector<8x256xf32>
    %c0_12 = arith.constant 0 : index
    %c5 = arith.constant 5 : index
    %37 = vector.load %arg2[%c0_12, %c5] : memref<8x27xf32, #tpu.memory_space<vmem>>, vector<8x1xf32>
    %38 = vector.extract_strided_slice %26 {offsets = [16, 0], sizes = [8, 256], strides = [1, 1]} : vector<24x256xf32> to vector<8x256xf32>
    %39 = vector.broadcast %37 : vector<8x1xf32> to vector<8x256xf32>
    %40 = arith.mulf %39, %38 : vector<8x256xf32>
    %41 = arith.addf %36, %40 : vector<8x256xf32>
    %c16_i32_13 = arith.constant 16 : i32
    %42 = tpu.dynamic_rotate %2 by %c16_i32_13 dim 1 : vector<24x256xf32>, i32 -> vector<24x256xf32>
    %c2_14 = arith.constant 2 : index
    %c0_15 = arith.constant 0 : index
    %43 = vector.load %arg1[%c2_14, %c0_15] : memref<9x256xf32, #tpu.memory_space<vmem>>, vector<1x256xf32>
    %44 = vector.broadcast %43 : vector<1x256xf32> to vector<24x256xf32>
    %45 = arith.mulf %42, %44 : vector<24x256xf32>
    %c0_16 = arith.constant 0 : index
    %c6 = arith.constant 6 : index
    %46 = vector.load %arg2[%c0_16, %c6] : memref<8x27xf32, #tpu.memory_space<vmem>>, vector<8x1xf32>
    %47 = vector.extract_strided_slice %45 {offsets = [0, 0], sizes = [8, 256], strides = [1, 1]} : vector<24x256xf32> to vector<8x256xf32>
    %48 = vector.broadcast %46 : vector<8x1xf32> to vector<8x256xf32>
    %49 = arith.mulf %48, %47 : vector<8x256xf32>
    %50 = arith.addf %41, %49 : vector<8x256xf32>
    %c0_17 = arith.constant 0 : index
    %c7 = arith.constant 7 : index
    %51 = vector.load %arg2[%c0_17, %c7] : memref<8x27xf32, #tpu.memory_space<vmem>>, vector<8x1xf32>
    %52 = vector.extract_strided_slice %45 {offsets = [8, 0], sizes = [8, 256], strides = [1, 1]} : vector<24x256xf32> to vector<8x256xf32>
    %53 = vector.broadcast %51 : vector<8x1xf32> to vector<8x256xf32>
    %54 = arith.mulf %53, %52 : vector<8x256xf32>
    %55 = arith.addf %50, %54 : vector<8x256xf32>
    %c0_18 = arith.constant 0 : index
    %c8 = arith.constant 8 : index
    %56 = vector.load %arg2[%c0_18, %c8] : memref<8x27xf32, #tpu.memory_space<vmem>>, vector<8x1xf32>
    %57 = vector.extract_strided_slice %45 {offsets = [16, 0], sizes = [8, 256], strides = [1, 1]} : vector<24x256xf32> to vector<8x256xf32>
    %58 = vector.broadcast %56 : vector<8x1xf32> to vector<8x256xf32>
    %59 = arith.mulf %58, %57 : vector<8x256xf32>
    %60 = arith.addf %55, %59 : vector<8x256xf32>
    %c3_19 = arith.constant 3 : index
    %c0_20 = arith.constant 0 : index
    %61 = vector.load %arg1[%c3_19, %c0_20] : memref<9x256xf32, #tpu.memory_space<vmem>>, vector<1x256xf32>
    %62 = vector.broadcast %61 : vector<1x256xf32> to vector<24x256xf32>
    %63 = arith.mulf %1, %62 : vector<24x256xf32>
    %c0_21 = arith.constant 0 : index
    %c9 = arith.constant 9 : index
    %64 = vector.load %arg2[%c0_21, %c9] : memref<8x27xf32, #tpu.memory_space<vmem>>, vector<8x1xf32>
    %65 = vector.extract_strided_slice %63 {offsets = [0, 0], sizes = [8, 256], strides = [1, 1]} : vector<24x256xf32> to vector<8x256xf32>
    %66 = vector.broadcast %64 : vector<8x1xf32> to vector<8x256xf32>
    %67 = arith.mulf %66, %65 : vector<8x256xf32>
    %68 = arith.addf %60, %67 : vector<8x256xf32>
    %c0_22 = arith.constant 0 : index
    %c10 = arith.constant 10 : index
    %69 = vector.load %arg2[%c0_22, %c10] : memref<8x27xf32, #tpu.memory_space<vmem>>, vector<8x1xf32>
    %70 = vector.extract_strided_slice %63 {offsets = [8, 0], sizes = [8, 256], strides = [1, 1]} : vector<24x256xf32> to vector<8x256xf32>
    %71 = vector.broadcast %69 : vector<8x1xf32> to vector<8x256xf32>
    %72 = arith.mulf %71, %70 : vector<8x256xf32>
    %73 = arith.addf %68, %72 : vector<8x256xf32>
    %c0_23 = arith.constant 0 : index
    %c11 = arith.constant 11 : index
    %74 = vector.load %arg2[%c0_23, %c11] : memref<8x27xf32, #tpu.memory_space<vmem>>, vector<8x1xf32>
    %75 = vector.extract_strided_slice %63 {offsets = [16, 0], sizes = [8, 256], strides = [1, 1]} : vector<24x256xf32> to vector<8x256xf32>
    %76 = vector.broadcast %74 : vector<8x1xf32> to vector<8x256xf32>
    %77 = arith.mulf %76, %75 : vector<8x256xf32>
    %78 = arith.addf %73, %77 : vector<8x256xf32>
    %c0_24 = arith.constant 0 : index
    %c12 = arith.constant 12 : index
    %79 = vector.load %arg2[%c0_24, %c12] : memref<8x27xf32, #tpu.memory_space<vmem>>, vector<8x1xf32>
    %80 = vector.extract_strided_slice %0 {offsets = [0, 0], sizes = [8, 256], strides = [1, 1]} : vector<24x256xf32> to vector<8x256xf32>
    %81 = vector.broadcast %79 : vector<8x1xf32> to vector<8x256xf32>
    %82 = arith.mulf %81, %80 : vector<8x256xf32>
    %83 = arith.addf %78, %82 : vector<8x256xf32>
    %c0_25 = arith.constant 0 : index
    %c13 = arith.constant 13 : index
    %84 = vector.load %arg2[%c0_25, %c13] : memref<8x27xf32, #tpu.memory_space<vmem>>, vector<8x1xf32>
    %85 = vector.extract_strided_slice %0 {offsets = [8, 0], sizes = [8, 256], strides = [1, 1]} : vector<24x256xf32> to vector<8x256xf32>
    %86 = vector.broadcast %84 : vector<8x1xf32> to vector<8x256xf32>
    %87 = arith.mulf %86, %85 : vector<8x256xf32>
    %88 = arith.addf %83, %87 : vector<8x256xf32>
    %c0_26 = arith.constant 0 : index
    %c14 = arith.constant 14 : index
    %89 = vector.load %arg2[%c0_26, %c14] : memref<8x27xf32, #tpu.memory_space<vmem>>, vector<8x1xf32>
    %90 = vector.extract_strided_slice %0 {offsets = [16, 0], sizes = [8, 256], strides = [1, 1]} : vector<24x256xf32> to vector<8x256xf32>
    %91 = vector.broadcast %89 : vector<8x1xf32> to vector<8x256xf32>
    %92 = arith.mulf %91, %90 : vector<8x256xf32>
    %93 = arith.addf %88, %92 : vector<8x256xf32>
    %c5_27 = arith.constant 5 : index
    %c0_28 = arith.constant 0 : index
    %94 = vector.load %arg1[%c5_27, %c0_28] : memref<9x256xf32, #tpu.memory_space<vmem>>, vector<1x256xf32>
    %95 = vector.broadcast %94 : vector<1x256xf32> to vector<24x256xf32>
    %96 = arith.mulf %2, %95 : vector<24x256xf32>
    %c0_29 = arith.constant 0 : index
    %c15 = arith.constant 15 : index
    %97 = vector.load %arg2[%c0_29, %c15] : memref<8x27xf32, #tpu.memory_space<vmem>>, vector<8x1xf32>
    %98 = vector.extract_strided_slice %96 {offsets = [0, 0], sizes = [8, 256], strides = [1, 1]} : vector<24x256xf32> to vector<8x256xf32>
    %99 = vector.broadcast %97 : vector<8x1xf32> to vector<8x256xf32>
    %100 = arith.mulf %99, %98 : vector<8x256xf32>
    %101 = arith.addf %93, %100 : vector<8x256xf32>
    %c0_30 = arith.constant 0 : index
    %c16 = arith.constant 16 : index
    %102 = vector.load %arg2[%c0_30, %c16] : memref<8x27xf32, #tpu.memory_space<vmem>>, vector<8x1xf32>
    %103 = vector.extract_strided_slice %96 {offsets = [8, 0], sizes = [8, 256], strides = [1, 1]} : vector<24x256xf32> to vector<8x256xf32>
    %104 = vector.broadcast %102 : vector<8x1xf32> to vector<8x256xf32>
    %105 = arith.mulf %104, %103 : vector<8x256xf32>
    %106 = arith.addf %101, %105 : vector<8x256xf32>
    %c0_31 = arith.constant 0 : index
    %c17 = arith.constant 17 : index
    %107 = vector.load %arg2[%c0_31, %c17] : memref<8x27xf32, #tpu.memory_space<vmem>>, vector<8x1xf32>
    %108 = vector.extract_strided_slice %96 {offsets = [16, 0], sizes = [8, 256], strides = [1, 1]} : vector<24x256xf32> to vector<8x256xf32>
    %109 = vector.broadcast %107 : vector<8x1xf32> to vector<8x256xf32>
    %110 = arith.mulf %109, %108 : vector<8x256xf32>
    %111 = arith.addf %106, %110 : vector<8x256xf32>
    %c240_i32 = arith.constant 240 : i32
    %112 = tpu.dynamic_rotate %1 by %c240_i32 dim 1 : vector<24x256xf32>, i32 -> vector<24x256xf32>
    %c6_32 = arith.constant 6 : index
    %c0_33 = arith.constant 0 : index
    %113 = vector.load %arg1[%c6_32, %c0_33] : memref<9x256xf32, #tpu.memory_space<vmem>>, vector<1x256xf32>
    %114 = vector.broadcast %113 : vector<1x256xf32> to vector<24x256xf32>
    %115 = arith.mulf %112, %114 : vector<24x256xf32>
    %c0_34 = arith.constant 0 : index
    %c18 = arith.constant 18 : index
    %116 = vector.load %arg2[%c0_34, %c18] : memref<8x27xf32, #tpu.memory_space<vmem>>, vector<8x1xf32>
    %117 = vector.extract_strided_slice %115 {offsets = [0, 0], sizes = [8, 256], strides = [1, 1]} : vector<24x256xf32> to vector<8x256xf32>
    %118 = vector.broadcast %116 : vector<8x1xf32> to vector<8x256xf32>
    %119 = arith.mulf %118, %117 : vector<8x256xf32>
    %120 = arith.addf %111, %119 : vector<8x256xf32>
    %c0_35 = arith.constant 0 : index
    %c19 = arith.constant 19 : index
    %121 = vector.load %arg2[%c0_35, %c19] : memref<8x27xf32, #tpu.memory_space<vmem>>, vector<8x1xf32>
    %122 = vector.extract_strided_slice %115 {offsets = [8, 0], sizes = [8, 256], strides = [1, 1]} : vector<24x256xf32> to vector<8x256xf32>
    %123 = vector.broadcast %121 : vector<8x1xf32> to vector<8x256xf32>
    %124 = arith.mulf %123, %122 : vector<8x256xf32>
    %125 = arith.addf %120, %124 : vector<8x256xf32>
    %c0_36 = arith.constant 0 : index
    %c20 = arith.constant 20 : index
    %126 = vector.load %arg2[%c0_36, %c20] : memref<8x27xf32, #tpu.memory_space<vmem>>, vector<8x1xf32>
    %127 = vector.extract_strided_slice %115 {offsets = [16, 0], sizes = [8, 256], strides = [1, 1]} : vector<24x256xf32> to vector<8x256xf32>
    %128 = vector.broadcast %126 : vector<8x1xf32> to vector<8x256xf32>
    %129 = arith.mulf %128, %127 : vector<8x256xf32>
    %130 = arith.addf %125, %129 : vector<8x256xf32>
    %c240_i32_37 = arith.constant 240 : i32
    %131 = tpu.dynamic_rotate %0 by %c240_i32_37 dim 1 : vector<24x256xf32>, i32 -> vector<24x256xf32>
    %c7_38 = arith.constant 7 : index
    %c0_39 = arith.constant 0 : index
    %132 = vector.load %arg1[%c7_38, %c0_39] : memref<9x256xf32, #tpu.memory_space<vmem>>, vector<1x256xf32>
    %133 = vector.broadcast %132 : vector<1x256xf32> to vector<24x256xf32>
    %134 = arith.mulf %131, %133 : vector<24x256xf32>
    %c0_40 = arith.constant 0 : index
    %c21 = arith.constant 21 : index
    %135 = vector.load %arg2[%c0_40, %c21] : memref<8x27xf32, #tpu.memory_space<vmem>>, vector<8x1xf32>
    %136 = vector.extract_strided_slice %134 {offsets = [0, 0], sizes = [8, 256], strides = [1, 1]} : vector<24x256xf32> to vector<8x256xf32>
    %137 = vector.broadcast %135 : vector<8x1xf32> to vector<8x256xf32>
    %138 = arith.mulf %137, %136 : vector<8x256xf32>
    %139 = arith.addf %130, %138 : vector<8x256xf32>
    %c0_41 = arith.constant 0 : index
    %c22 = arith.constant 22 : index
    %140 = vector.load %arg2[%c0_41, %c22] : memref<8x27xf32, #tpu.memory_space<vmem>>, vector<8x1xf32>
    %141 = vector.extract_strided_slice %134 {offsets = [8, 0], sizes = [8, 256], strides = [1, 1]} : vector<24x256xf32> to vector<8x256xf32>
    %142 = vector.broadcast %140 : vector<8x1xf32> to vector<8x256xf32>
    %143 = arith.mulf %142, %141 : vector<8x256xf32>
    %144 = arith.addf %139, %143 : vector<8x256xf32>
    %c0_42 = arith.constant 0 : index
    %c23 = arith.constant 23 : index
    %145 = vector.load %arg2[%c0_42, %c23] : memref<8x27xf32, #tpu.memory_space<vmem>>, vector<8x1xf32>
    %146 = vector.extract_strided_slice %134 {offsets = [16, 0], sizes = [8, 256], strides = [1, 1]} : vector<24x256xf32> to vector<8x256xf32>
    %147 = vector.broadcast %145 : vector<8x1xf32> to vector<8x256xf32>
    %148 = arith.mulf %147, %146 : vector<8x256xf32>
    %149 = arith.addf %144, %148 : vector<8x256xf32>
    %c240_i32_43 = arith.constant 240 : i32
    %150 = tpu.dynamic_rotate %2 by %c240_i32_43 dim 1 : vector<24x256xf32>, i32 -> vector<24x256xf32>
    %c8_44 = arith.constant 8 : index
    %c0_45 = arith.constant 0 : index
    %151 = vector.load %arg1[%c8_44, %c0_45] : memref<9x256xf32, #tpu.memory_space<vmem>>, vector<1x256xf32>
    %152 = vector.broadcast %151 : vector<1x256xf32> to vector<24x256xf32>
    %153 = arith.mulf %150, %152 : vector<24x256xf32>
    %c0_46 = arith.constant 0 : index
    %c24 = arith.constant 24 : index
    %154 = vector.load %arg2[%c0_46, %c24] : memref<8x27xf32, #tpu.memory_space<vmem>>, vector<8x1xf32>
    %155 = vector.extract_strided_slice %153 {offsets = [0, 0], sizes = [8, 256], strides = [1, 1]} : vector<24x256xf32> to vector<8x256xf32>
    %156 = vector.broadcast %154 : vector<8x1xf32> to vector<8x256xf32>
    %157 = arith.mulf %156, %155 : vector<8x256xf32>
    %158 = arith.addf %149, %157 : vector<8x256xf32>
    %c0_47 = arith.constant 0 : index
    %c25 = arith.constant 25 : index
    %159 = vector.load %arg2[%c0_47, %c25] : memref<8x27xf32, #tpu.memory_space<vmem>>, vector<8x1xf32>
    %160 = vector.extract_strided_slice %153 {offsets = [8, 0], sizes = [8, 256], strides = [1, 1]} : vector<24x256xf32> to vector<8x256xf32>
    %161 = vector.broadcast %159 : vector<8x1xf32> to vector<8x256xf32>
    %162 = arith.mulf %161, %160 : vector<8x256xf32>
    %163 = arith.addf %158, %162 : vector<8x256xf32>
    %c0_48 = arith.constant 0 : index
    %c26 = arith.constant 26 : index
    %164 = vector.load %arg2[%c0_48, %c26] : memref<8x27xf32, #tpu.memory_space<vmem>>, vector<8x1xf32>
    %165 = vector.extract_strided_slice %153 {offsets = [16, 0], sizes = [8, 256], strides = [1, 1]} : vector<24x256xf32> to vector<8x256xf32>
    %166 = vector.broadcast %164 : vector<8x1xf32> to vector<8x256xf32>
    %167 = arith.mulf %166, %165 : vector<8x256xf32>
    %168 = arith.addf %163, %167 : vector<8x256xf32>
    %169 = tpu.iota {dimensions = array<i32: 0>} : vector<8x1xi32>
    %cst_49 = arith.constant 0.000000e+00 : f32
    %170 = vector.broadcast %cst_49 : f32 to vector<8x1xf32>
    %cst_50 = arith.constant 0.000000e+00 : f32
    %171 = vector.broadcast %cst_50 : f32 to vector<8x1xf32>
    %c0_i32 = arith.constant 0 : i32
    %172 = vector.broadcast %c0_i32 : i32 to vector<8x1xi32>
    %173 = arith.cmpi sge, %169, %172 : vector<8x1xi32>
    %c2_i32 = arith.constant 2 : i32
    %174 = vector.broadcast %c2_i32 : i32 to vector<8x1xi32>
    %175 = arith.cmpi slt, %169, %174 : vector<8x1xi32>
    %176 = arith.andi %173, %175 : vector<8x1xi1>
    %cst_51 = arith.constant 0.000000e+00 : f32
    %177 = vector.shape_cast %176 : vector<8x1xi1> to vector<8x1xi1>
    %178 = vector.broadcast %177 : vector<8x1xi1> to vector<8x256xi1>
    %179 = vector.broadcast %cst_51 : f32 to vector<8x256xf32>
    %180 = arith.select %178, %168, %179 : vector<8x256xi1>, vector<8x256xf32>
    %cst_52 = arith.constant dense<0.000000e+00> : vector<8xf32>
    %181 = vector.multi_reduction <add>, %180, %cst_52 [1] : vector<8x256xf32> to vector<8xf32>
    %182 = vector.shape_cast %181 : vector<8xf32> to vector<8x1xf32>
    %cst_53 = arith.constant dense<0.000000e+00> : vector<1xf32>
    %183 = vector.multi_reduction <add>, %182, %cst_53 [0] : vector<8x1xf32> to vector<1xf32>
    %184 = vector.shape_cast %183 : vector<1xf32> to vector<1x1xf32>
    %cst_54 = arith.constant 0.001953125 : f32
    %185 = vector.broadcast %cst_54 : f32 to vector<1x1xf32>
    %186 = arith.mulf %184, %185 : vector<1x1xf32>
    %187 = vector.broadcast %186 : vector<1x1xf32> to vector<8x256xf32>
    %188 = arith.subf %168, %187 : vector<8x256xf32>
    %cst_55 = arith.constant 0.000000e+00 : f32
    %189 = vector.shape_cast %176 : vector<8x1xi1> to vector<8x1xi1>
    %190 = vector.broadcast %189 : vector<8x1xi1> to vector<8x256xi1>
    %191 = vector.broadcast %cst_55 : f32 to vector<8x256xf32>
    %192 = arith.select %190, %188, %191 : vector<8x256xi1>, vector<8x256xf32>
    %193 = arith.mulf %192, %192 : vector<8x256xf32>
    %cst_56 = arith.constant dense<0.000000e+00> : vector<8xf32>
    %194 = vector.multi_reduction <add>, %193, %cst_56 [1] : vector<8x256xf32> to vector<8xf32>
    %195 = vector.shape_cast %194 : vector<8xf32> to vector<8x1xf32>
    %cst_57 = arith.constant dense<0.000000e+00> : vector<1xf32>
    %196 = vector.multi_reduction <add>, %195, %cst_57 [0] : vector<8x1xf32> to vector<1xf32>
    %197 = vector.shape_cast %196 : vector<1xf32> to vector<1x1xf32>
    %cst_58 = arith.constant 0.001953125 : f32
    %198 = vector.broadcast %cst_58 : f32 to vector<1x1xf32>
    %199 = arith.mulf %197, %198 : vector<1x1xf32>
    %cst_59 = arith.constant 9.99999974E-6 : f32
    %200 = vector.broadcast %cst_59 : f32 to vector<1x1xf32>
    %201 = arith.addf %199, %200 : vector<1x1xf32>
    %202 = math.rsqrt %201 : vector<1x1xf32>
    %c0_60 = arith.constant 0 : index
    %203 = memref.load %arg3[%c0_60] : memref<3xf32, #tpu.memory_space<smem>>
    %204 = vector.broadcast %203 : f32 to vector<1x1xf32>
    %205 = arith.mulf %202, %204 : vector<1x1xf32>
    %c0_61 = arith.constant 0 : index
    %206 = memref.load %arg4[%c0_61] : memref<3xf32, #tpu.memory_space<smem>>
    %207 = arith.mulf %186, %205 : vector<1x1xf32>
    %208 = vector.broadcast %206 : f32 to vector<1x1xf32>
    %209 = arith.subf %208, %207 : vector<1x1xf32>
    %210 = vector.shape_cast %205 : vector<1x1xf32> to vector<1x1xf32>
    %211 = vector.broadcast %210 : vector<1x1xf32> to vector<8x1xf32>
    %212 = arith.select %176, %211, %170 : vector<8x1xi1>, vector<8x1xf32>
    %213 = vector.shape_cast %209 : vector<1x1xf32> to vector<1x1xf32>
    %214 = vector.broadcast %213 : vector<1x1xf32> to vector<8x1xf32>
    %215 = arith.select %176, %214, %171 : vector<8x1xi1>, vector<8x1xf32>
    %c2_i32_62 = arith.constant 2 : i32
    %216 = vector.broadcast %c2_i32_62 : i32 to vector<8x1xi32>
    %217 = arith.cmpi sge, %169, %216 : vector<8x1xi32>
    %c4_i32 = arith.constant 4 : i32
    %218 = vector.broadcast %c4_i32 : i32 to vector<8x1xi32>
    %219 = arith.cmpi slt, %169, %218 : vector<8x1xi32>
    %220 = arith.andi %217, %219 : vector<8x1xi1>
    %cst_63 = arith.constant 0.000000e+00 : f32
    %221 = vector.shape_cast %220 : vector<8x1xi1> to vector<8x1xi1>
    %222 = vector.broadcast %221 : vector<8x1xi1> to vector<8x256xi1>
    %223 = vector.broadcast %cst_63 : f32 to vector<8x256xf32>
    %224 = arith.select %222, %168, %223 : vector<8x256xi1>, vector<8x256xf32>
    %cst_64 = arith.constant dense<0.000000e+00> : vector<8xf32>
    %225 = vector.multi_reduction <add>, %224, %cst_64 [1] : vector<8x256xf32> to vector<8xf32>
    %226 = vector.shape_cast %225 : vector<8xf32> to vector<8x1xf32>
    %cst_65 = arith.constant dense<0.000000e+00> : vector<1xf32>
    %227 = vector.multi_reduction <add>, %226, %cst_65 [0] : vector<8x1xf32> to vector<1xf32>
    %228 = vector.shape_cast %227 : vector<1xf32> to vector<1x1xf32>
    %cst_66 = arith.constant 0.001953125 : f32
    %229 = vector.broadcast %cst_66 : f32 to vector<1x1xf32>
    %230 = arith.mulf %228, %229 : vector<1x1xf32>
    %231 = vector.broadcast %230 : vector<1x1xf32> to vector<8x256xf32>
    %232 = arith.subf %168, %231 : vector<8x256xf32>
    %cst_67 = arith.constant 0.000000e+00 : f32
    %233 = vector.shape_cast %220 : vector<8x1xi1> to vector<8x1xi1>
    %234 = vector.broadcast %233 : vector<8x1xi1> to vector<8x256xi1>
    %235 = vector.broadcast %cst_67 : f32 to vector<8x256xf32>
    %236 = arith.select %234, %232, %235 : vector<8x256xi1>, vector<8x256xf32>
    %237 = arith.mulf %236, %236 : vector<8x256xf32>
    %cst_68 = arith.constant dense<0.000000e+00> : vector<8xf32>
    %238 = vector.multi_reduction <add>, %237, %cst_68 [1] : vector<8x256xf32> to vector<8xf32>
    %239 = vector.shape_cast %238 : vector<8xf32> to vector<8x1xf32>
    %cst_69 = arith.constant dense<0.000000e+00> : vector<1xf32>
    %240 = vector.multi_reduction <add>, %239, %cst_69 [0] : vector<8x1xf32> to vector<1xf32>
    %241 = vector.shape_cast %240 : vector<1xf32> to vector<1x1xf32>
    %cst_70 = arith.constant 0.001953125 : f32
    %242 = vector.broadcast %cst_70 : f32 to vector<1x1xf32>
    %243 = arith.mulf %241, %242 : vector<1x1xf32>
    %cst_71 = arith.constant 9.99999974E-6 : f32
    %244 = vector.broadcast %cst_71 : f32 to vector<1x1xf32>
    %245 = arith.addf %243, %244 : vector<1x1xf32>
    %246 = math.rsqrt %245 : vector<1x1xf32>
    %c1_72 = arith.constant 1 : index
    %247 = memref.load %arg3[%c1_72] : memref<3xf32, #tpu.memory_space<smem>>
    %248 = vector.broadcast %247 : f32 to vector<1x1xf32>
    %249 = arith.mulf %246, %248 : vector<1x1xf32>
    %c1_73 = arith.constant 1 : index
    %250 = memref.load %arg4[%c1_73] : memref<3xf32, #tpu.memory_space<smem>>
    %251 = arith.mulf %230, %249 : vector<1x1xf32>
    %252 = vector.broadcast %250 : f32 to vector<1x1xf32>
    %253 = arith.subf %252, %251 : vector<1x1xf32>
    %254 = vector.shape_cast %249 : vector<1x1xf32> to vector<1x1xf32>
    %255 = vector.broadcast %254 : vector<1x1xf32> to vector<8x1xf32>
    %256 = arith.select %220, %255, %212 : vector<8x1xi1>, vector<8x1xf32>
    %257 = vector.shape_cast %253 : vector<1x1xf32> to vector<1x1xf32>
    %258 = vector.broadcast %257 : vector<1x1xf32> to vector<8x1xf32>
    %259 = arith.select %220, %258, %215 : vector<8x1xi1>, vector<8x1xf32>
    %c4_i32_74 = arith.constant 4 : i32
    %260 = vector.broadcast %c4_i32_74 : i32 to vector<8x1xi32>
    %261 = arith.cmpi sge, %169, %260 : vector<8x1xi32>
    %c6_i32 = arith.constant 6 : i32
    %262 = vector.broadcast %c6_i32 : i32 to vector<8x1xi32>
    %263 = arith.cmpi slt, %169, %262 : vector<8x1xi32>
    %264 = arith.andi %261, %263 : vector<8x1xi1>
    %cst_75 = arith.constant 0.000000e+00 : f32
    %265 = vector.shape_cast %264 : vector<8x1xi1> to vector<8x1xi1>
    %266 = vector.broadcast %265 : vector<8x1xi1> to vector<8x256xi1>
    %267 = vector.broadcast %cst_75 : f32 to vector<8x256xf32>
    %268 = arith.select %266, %168, %267 : vector<8x256xi1>, vector<8x256xf32>
    %cst_76 = arith.constant dense<0.000000e+00> : vector<8xf32>
    %269 = vector.multi_reduction <add>, %268, %cst_76 [1] : vector<8x256xf32> to vector<8xf32>
    %270 = vector.shape_cast %269 : vector<8xf32> to vector<8x1xf32>
    %cst_77 = arith.constant dense<0.000000e+00> : vector<1xf32>
    %271 = vector.multi_reduction <add>, %270, %cst_77 [0] : vector<8x1xf32> to vector<1xf32>
    %272 = vector.shape_cast %271 : vector<1xf32> to vector<1x1xf32>
    %cst_78 = arith.constant 0.001953125 : f32
    %273 = vector.broadcast %cst_78 : f32 to vector<1x1xf32>
    %274 = arith.mulf %272, %273 : vector<1x1xf32>
    %275 = vector.broadcast %274 : vector<1x1xf32> to vector<8x256xf32>
    %276 = arith.subf %168, %275 : vector<8x256xf32>
    %cst_79 = arith.constant 0.000000e+00 : f32
    %277 = vector.shape_cast %264 : vector<8x1xi1> to vector<8x1xi1>
    %278 = vector.broadcast %277 : vector<8x1xi1> to vector<8x256xi1>
    %279 = vector.broadcast %cst_79 : f32 to vector<8x256xf32>
    %280 = arith.select %278, %276, %279 : vector<8x256xi1>, vector<8x256xf32>
    %281 = arith.mulf %280, %280 : vector<8x256xf32>
    %cst_80 = arith.constant dense<0.000000e+00> : vector<8xf32>
    %282 = vector.multi_reduction <add>, %281, %cst_80 [1] : vector<8x256xf32> to vector<8xf32>
    %283 = vector.shape_cast %282 : vector<8xf32> to vector<8x1xf32>
    %cst_81 = arith.constant dense<0.000000e+00> : vector<1xf32>
    %284 = vector.multi_reduction <add>, %283, %cst_81 [0] : vector<8x1xf32> to vector<1xf32>
    %285 = vector.shape_cast %284 : vector<1xf32> to vector<1x1xf32>
    %cst_82 = arith.constant 0.001953125 : f32
    %286 = vector.broadcast %cst_82 : f32 to vector<1x1xf32>
    %287 = arith.mulf %285, %286 : vector<1x1xf32>
    %cst_83 = arith.constant 9.99999974E-6 : f32
    %288 = vector.broadcast %cst_83 : f32 to vector<1x1xf32>
    %289 = arith.addf %287, %288 : vector<1x1xf32>
    %290 = math.rsqrt %289 : vector<1x1xf32>
    %c2_84 = arith.constant 2 : index
    %291 = memref.load %arg3[%c2_84] : memref<3xf32, #tpu.memory_space<smem>>
    %292 = vector.broadcast %291 : f32 to vector<1x1xf32>
    %293 = arith.mulf %290, %292 : vector<1x1xf32>
    %c2_85 = arith.constant 2 : index
    %294 = memref.load %arg4[%c2_85] : memref<3xf32, #tpu.memory_space<smem>>
    %295 = arith.mulf %274, %293 : vector<1x1xf32>
    %296 = vector.broadcast %294 : f32 to vector<1x1xf32>
    %297 = arith.subf %296, %295 : vector<1x1xf32>
    %298 = vector.shape_cast %293 : vector<1x1xf32> to vector<1x1xf32>
    %299 = vector.broadcast %298 : vector<1x1xf32> to vector<8x1xf32>
    %300 = arith.select %264, %299, %256 : vector<8x1xi1>, vector<8x1xf32>
    %301 = vector.shape_cast %297 : vector<1x1xf32> to vector<1x1xf32>
    %302 = vector.broadcast %301 : vector<1x1xf32> to vector<8x1xf32>
    %303 = arith.select %264, %302, %259 : vector<8x1xi1>, vector<8x1xf32>
    %304 = vector.broadcast %300 : vector<8x1xf32> to vector<8x256xf32>
    %305 = arith.mulf %168, %304 : vector<8x256xf32>
    %306 = vector.broadcast %303 : vector<8x1xf32> to vector<8x256xf32>
    %307 = arith.addf %305, %306 : vector<8x256xf32>
    %cst_86 = arith.constant 0.000000e+00 : f32
    %308 = vector.broadcast %cst_86 : f32 to vector<8x256xf32>
    %309 = arith.maximumf %307, %308 : vector<8x256xf32>
    %c0_87 = arith.constant 0 : index
    %c0_88 = arith.constant 0 : index
    %310 = vector.load %arg5[%c0_87, %c0_88] : memref<8x256xf32, #tpu.memory_space<vmem>>, vector<8x256xf32>
    tpu.vector_store %arg5[%c0_87, %c0_88], %309 {strides = array<i32>} : memref<8x256xf32, #tpu.memory_space<vmem>>, vector<8x256xf32>,
    return
  }
}

</mosaic_0001>

<llo_original>
// kernel: tpu_custom_call.1
$region0: #{tpu_custom_call.1}
  #allocation0 [shape = 'u32[]', space=smem, size = 0x4, offset = 0x4, fixed_abs, tag = 'smem constant byte address 0x4 - core index']
  #allocation1 [shape = 'u32[72,128]{1,0:T(1,128)}', space=vmem, size = 0x9000, scoped, tag = 'internal scratch']
  %s0 = inlined_call_operand.hbm [shape: f32[24,256], index: 0, kind: input, shape index: {}]
  %s1 = inlined_call_operand.hbm [shape: f32[9,256], index: 1, kind: input, shape index: {}]
  %s2 = inlined_call_operand.hbm [shape: f32[8,27], index: 2, kind: input, shape index: {}]
  %s3 = inlined_call_operand.vmem [shape: f32[3], index: 3, kind: input, shape index: {}]
  %s4 = inlined_call_operand.vmem [shape: f32[3], index: 4, kind: input, shape index: {}]
  %s5 = inlined_call_operand.hbm [shape: f32[8,256], index: 5, kind: output, shape index: {}]
  %s6 = sld [smem:[#allocation0]]
  $region50: #{tpu_custom_call.1} parent=0
    _
  %s8 = ssub.s32 1, %s6
  %s9 = scalar_select 0, %s8, %s6
  $region1: #{tpu_custom_call.1} parent=0
    #allocation2 [shape = 'u8[24576]{0}', space=vmem, size = 0x6000, scoped, tag = 'input window, operand 0, single buffered']
    #allocation3 [shape = 's32[1]{0}', space=sflag, size = 0x4, scoped, tag = 'scoped memory for tpu_custom_call.1']
    #allocation4 [shape = 's32[1]{0}', space=sflag, size = 0x4, scoped, tag = 'scoped memory for tpu_custom_call.1']
    #allocation5 [shape = 's32[1]{0}', space=sflag, size = 0x4, scoped, tag = 'scoped memory for tpu_custom_call.1']
    #allocation6 [shape = 'u8[16384]{0}', space=vmem, size = 0x4000, scoped, tag = 'input window, operand 1, single buffered']
    #allocation7 [shape = 's32[1]{0}', space=sflag, size = 0x4, scoped, tag = 'scoped memory for tpu_custom_call.1']
    #allocation8 [shape = 'u8[4096]{0}', space=vmem, size = 0x1000, scoped, tag = 'input window, operand 2, single buffered']
    #allocation9 [shape = 'u8[512]{0}', space=smem, size = 0x200, scoped, tag = 'input window, operand 3, single buffered']
    #allocation10 [shape = 'u8[512]{0}', space=smem, size = 0x200, scoped, tag = 'input window, operand 4, single buffered']
    #allocation11 [shape = 's32[1]{0}', space=sflag, size = 0x4, scoped, tag = 'scoped memory for tpu_custom_call.1']
    #allocation12 [shape = 'u8[8192]{0}', space=vmem, size = 0x2000, scoped, tag = 'output window, operand 0, single buffered']
    %10 = vsyncpa [#allocation3], 0
    %11 = vsyncpa [#allocation7], 0
    %12 = vsyncpa [#allocation5], 0
    %13 = vsyncpa [#allocation11], 0
    %14 = vsyncpa [#allocation4], 0
    // Predicated region
    $region2: #{tpu_custom_call.1} parent=1 // pred_check
      _
    $region3: #{tpu_custom_call.1} parent=1 // pred_check_branch
      %16 = sbr.rel (0) target = $region5
    $region4: #{tpu_custom_call.1} parent=1 // pred_region
      %18 = vsyncadd [#allocation3], 0
      %s19 = sshll.u32 %s0, 4
      %s20 = int_to_ptr.hbm [resolvable:$true] %s19
      %s21 = sshll.u32 [#allocation2], 4
      %s22 = int_to_ptr.vmem [resolvable:$true] %s21
      %27 = dma.hbm_to_vmem [thread:$0]  %s20, 768, %s22, [#allocation3], 256, 256, 16
    $region5: #{tpu_custom_call.1} parent=1 // pred_fallthru
      _
    // Predicated region
    $region6: #{tpu_custom_call.1} parent=1 // pred_check
      _
    $region7: #{tpu_custom_call.1} parent=1 // pred_check_branch
      %29 = sbr.rel (0) target = $region9
    $region8: #{tpu_custom_call.1} parent=1 // pred_region
      %31 = vsyncadd [#allocation7], 0
      %s32 = sshll.u32 %s1, 4
      %s33 = int_to_ptr.hbm [resolvable:$true] %s32
      %s34 = sshll.u32 [#allocation6], 4
      %s35 = int_to_ptr.vmem [resolvable:$true] %s34
      %40 = dma.hbm_to_vmem [thread:$0]  %s33, 512, %s35, [#allocation7], 256, 256, 16
    $region9: #{tpu_custom_call.1} parent=1 // pred_fallthru
      _
    // Predicated region
    $region10: #{tpu_custom_call.1} parent=1 // pred_check
      _
    $region11: #{tpu_custom_call.1} parent=1 // pred_check_branch
      %42 = sbr.rel (0) target = $region13
    $region12: #{tpu_custom_call.1} parent=1 // pred_region
      %44 = vsyncadd [#allocation7], 0
      %s46 = sshll.u32 %s2, 4
      %s47 = int_to_ptr.hbm [resolvable:$true] %s46
      %s48 = sshll.u32 [#allocation8], 4
      %s49 = int_to_ptr.vmem [resolvable:$true] %s48
      %51 = dma.hbm_to_vmem [thread:$0]  %s47, 128, %s49, [#allocation7]
    $region13: #{tpu_custom_call.1} parent=1 // pred_fallthru
      _
    // Predicated region
    $region14: #{tpu_custom_call.1} parent=1 // pred_check
      _
    $region15: #{tpu_custom_call.1} parent=1 // pred_check_branch
      %53 = sbr.rel (0) target = $region17
    $region16: #{tpu_custom_call.1} parent=1 // pred_region
      %55 = vsyncadd [#allocation5], 0
      %s57 = sshll.u32 %s3, 4
      %s58 = int_to_ptr.vmem [resolvable:$true] %s57
      %60 = dma.vmem_to_smem %s58, 16, [#allocation9], [#allocation5]
    $region17: #{tpu_custom_call.1} parent=1 // pred_fallthru
      _
    // Predicated region
    $region18: #{tpu_custom_call.1} parent=1 // pred_check
      _
    $region19: #{tpu_custom_call.1} parent=1 // pred_check_branch
      %62 = sbr.rel (0) target = $region21
    $region20: #{tpu_custom_call.1} parent=1 // pred_region
      %64 = vsyncadd [#allocation11], 0
      %s66 = sshll.u32 %s4, 4
      %s67 = int_to_ptr.vmem [resolvable:$true] %s66
      %69 = dma.vmem_to_smem %s67, 16, [#allocation10], [#allocation11]
    $region21: #{tpu_custom_call.1} parent=1 // pred_fallthru
      _
    // Predicated region
    $region22: #{tpu_custom_call.1} parent=1 // pred_check
      _
    $region23: #{tpu_custom_call.1} parent=1 // pred_check_branch
      %71 = sbr.rel (0) target = $region25
    $region24: #{tpu_custom_call.1} parent=1 // pred_region
      %73 = dma.done [#allocation3], 768
    $region25: #{tpu_custom_call.1} parent=1 // pred_fallthru
      _
    // Predicated region
    $region26: #{tpu_custom_call.1} parent=1 // pred_check
      _
    $region27: #{tpu_custom_call.1} parent=1 // pred_check_branch
      %75 = sbr.rel (0) target = $region29
    $region28: #{tpu_custom_call.1} parent=1 // pred_region
      %77 = dma.done [#allocation7], 512
    $region29: #{tpu_custom_call.1} parent=1 // pred_fallthru
      _
    // Predicated region
    $region30: #{tpu_custom_call.1} parent=1 // pred_check
      _
    $region31: #{tpu_custom_call.1} parent=1 // pred_check_branch
      %79 = sbr.rel (0) target = $region33
    $region32: #{tpu_custom_call.1} parent=1 // pred_region
      %81 = dma.done [#allocation7], 128
    $region33: #{tpu_custom_call.1} parent=1 // pred_fallthru
      _
    // Predicated region
    $region34: #{tpu_custom_call.1} parent=1 // pred_check
      _
    $region35: #{tpu_custom_call.1} parent=1 // pred_check_branch
      %83 = sbr.rel (0) target = $region37
    $region36: #{tpu_custom_call.1} parent=1 // pred_region
      %85 = dma.done [#allocation5], 16
    $region37: #{tpu_custom_call.1} parent=1 // pred_fallthru
      _
    // Predicated region
    $region38: #{tpu_custom_call.1} parent=1 // pred_check
      _
    $region39: #{tpu_custom_call.1} parent=1 // pred_check_branch
      %87 = sbr.rel (0) target = $region41
    $region40: #{tpu_custom_call.1} parent=1 // pred_region
      %89 = dma.done [#allocation11], 16
    $region41: #{tpu_custom_call.1} parent=1 // pred_fallthru
      _
    %90 = sfence
    %v91 = vld [vmem:[#allocation2] sm:$0xff]
    %v92 = vld [vmem:[#allocation2 + $0x8] sm:$0xff]
    %v93 = vld [vmem:[#allocation2 + $0x10] sm:$0xff]
    %v94 = vld [vmem:[#allocation2 + $0x18] sm:$0xff]
    %v95 = vld [vmem:[#allocation2 + $0x20] sm:$0xff]
    %v96 = vld [vmem:[#allocation2 + $0x28] sm:$0xff]
    %97 = vrot.lane.b32.xlu0 %v91, 1
    %v98 = vpop.permute.xlu0 %97
    %99 = vrot.lane.b32.xlu0 %v93, 1
    %v100 = vpop.permute.xlu0 %99
    %101 = vrot.lane.b32.xlu0 %v95, 1
    %v102 = vpop.permute.xlu0 %101
    %103 = vrot.lane.b32.xlu0 %v92, 1
    %v104 = vpop.permute.xlu0 %103
    %105 = vrot.lane.b32.xlu0 %v94, 1
    %v106 = vpop.permute.xlu0 %105
    %107 = vrot.lane.b32.xlu0 %v96, 1
    %v108 = vpop.permute.xlu0 %107
    %v109 = vlaneseq
    %v110 = vand.u32 %v109, 127
    %vm111 = vcmp.lt.s32.totalorder %v110, 1
    %v112 = vsel %vm111, %v98, %v104
    %v113 = vsel %vm111, %v100, %v106
    %v114 = vsel %vm111, %v102, %v108
    %v115 = vsel %vm111, %v104, %v98
    %v116 = vsel %vm111, %v106, %v100
    %v117 = vsel %vm111, %v108, %v102
    %118 = vrot.lane.b32.xlu0 %v91, 127
    %v119 = vpop.permute.xlu0 %118
    %120 = vrot.lane.b32.xlu0 %v93, 127
    %v121 = vpop.permute.xlu0 %120
    %122 = vrot.lane.b32.xlu0 %v95, 127
    %v123 = vpop.permute.xlu0 %122
    %124 = vrot.lane.b32.xlu0 %v92, 127
    %v125 = vpop.permute.xlu0 %124
    %126 = vrot.lane.b32.xlu0 %v94, 127
    %v127 = vpop.permute.xlu0 %126
    %128 = vrot.lane.b32.xlu0 %v96, 127
    %v129 = vpop.permute.xlu0 %128
    %vm130 = vcmp.lt.s32.totalorder %v110, 127
    %v131 = vsel %vm130, %v119, %v125
    %v132 = vsel %vm130, %v121, %v127
    %v133 = vsel %vm130, %v123, %v129
    %v134 = vsel %vm130, %v125, %v119
    %v135 = vsel %vm130, %v127, %v121
    %v136 = vsel %vm130, %v129, %v123
    %137 = vrot.lane.b32.xlu0 %v115, 16
    %v138 = vpop.permute.xlu0 %137
    %139 = vrot.lane.b32.xlu0 %v116, 16
    %v140 = vpop.permute.xlu0 %139
    %141 = vrot.lane.b32.xlu0 %v117, 16
    %v142 = vpop.permute.xlu0 %141
    %143 = vrot.lane.b32.xlu0 %v112, 16
    %v144 = vpop.permute.xlu0 %143
    %145 = vrot.lane.b32.xlu0 %v113, 16
    %v146 = vpop.permute.xlu0 %145
    %147 = vrot.lane.b32.xlu0 %v114, 16
    %v148 = vpop.permute.xlu0 %147
    %vm149 = vcmp.lt.s32.totalorder %v110, 16
    %v150 = vsel %vm149, %v138, %v144
    %v151 = vsel %vm149, %v140, %v146
    %v152 = vsel %vm149, %v142, %v148
    %v153 = vsel %vm149, %v144, %v138
    %v154 = vsel %vm149, %v146, %v140
    %v155 = vsel %vm149, %v148, %v142
    %v156 = vld [vmem:[#allocation6] ss:$8 sm:$0x3]
    %v158 = vperm.slane %v156, 0
    %v159 = vperm.slane %v156, 1
    %v162 = vmul.f32 %v153, %v158
    %v163 = vmul.f32 %v150, %v159
    %v164 = vmul.f32 %v154, %v158
    %v165 = vmul.f32 %v151, %v159
    %v166 = vmul.f32 %v155, %v158
    %v167 = vmul.f32 %v152, %v159
    %v168 = vld [vmem:[#allocation8] sm:$0xff]
    %170 = vset.pattern.permute.xlu0 0
    %171 = vperm.xlu0 %170, %v168
    %v172 = vpop.permute.xlu0 %171
    %v174 = vmul.f32 %v172, %v162
    %v175 = vmul.f32 %v172, %v163
    %v176 = vadd.f32 %v174, 0.0
    %v177 = vadd.f32 %v175, 0.0
    %178 = vset.pattern.permute.xlu0 1
    %179 = vperm.xlu0 %178, %v168
    %v180 = vpop.permute.xlu0 %179
    %v182 = vmul.f32 %v180, %v164
    %v183 = vmul.f32 %v180, %v165
    %v184 = vadd.f32 %v176, %v182
    %v185 = vadd.f32 %v177, %v183
    %186 = vset.pattern.permute.xlu0 2
    %187 = vperm.xlu0 %186, %v168
    %v188 = vpop.permute.xlu0 %187
    %v190 = vmul.f32 %v188, %v166
    %v191 = vmul.f32 %v188, %v167
    %v192 = vadd.f32 %v184, %v190
    %v193 = vadd.f32 %v185, %v191
    %194 = vrot.lane.b32.xlu0 %v91, 16
    %v195 = vpop.permute.xlu0 %194
    %196 = vrot.lane.b32.xlu0 %v93, 16
    %v197 = vpop.permute.xlu0 %196
    %198 = vrot.lane.b32.xlu0 %v95, 16
    %v199 = vpop.permute.xlu0 %198
    %200 = vrot.lane.b32.xlu0 %v92, 16
    %v201 = vpop.permute.xlu0 %200
    %202 = vrot.lane.b32.xlu0 %v94, 16
    %v203 = vpop.permute.xlu0 %202
    %204 = vrot.lane.b32.xlu0 %v96, 16
    %v205 = vpop.permute.xlu0 %204
    %v206 = vsel %vm149, %v195, %v201
    %v207 = vsel %vm149, %v197, %v203
    %v208 = vsel %vm149, %v199, %v205
    %v209 = vsel %vm149, %v201, %v195
    %v210 = vsel %vm149, %v203, %v197
    %v211 = vsel %vm149, %v205, %v199
    %s212 = scalar_lea.vmem [#allocation6], 1
    %v213 = vld [vmem:[%s212] ss:$8 sm:$0x3]
    %v215 = vperm.slane %v213, 0
    %v216 = vperm.slane %v213, 1
    %v219 = vmul.f32 %v209, %v215
    %v220 = vmul.f32 %v206, %v216
    %v221 = vmul.f32 %v210, %v215
    %v222 = vmul.f32 %v207, %v216
    %v223 = vmul.f32 %v211, %v215
    %v224 = vmul.f32 %v208, %v216
    %225 = vset.pattern.permute.xlu0 3
    %226 = vperm.xlu0 %225, %v168
    %v227 = vpop.permute.xlu0 %226
    %v229 = vmul.f32 %v227, %v219
    %v230 = vmul.f32 %v227, %v220
    %v231 = vadd.f32 %v192, %v229
    %v232 = vadd.f32 %v193, %v230
    %233 = vset.pattern.permute.xlu0 4
    %234 = vperm.xlu0 %233, %v168
    %v235 = vpop.permute.xlu0 %234
    %v237 = vmul.f32 %v235, %v221
    %v238 = vmul.f32 %v235, %v222
    %v239 = vadd.f32 %v231, %v237
    %v240 = vadd.f32 %v232, %v238
    %241 = vset.pattern.permute.xlu0 5
    %242 = vperm.xlu0 %241, %v168
    %v243 = vpop.permute.xlu0 %242
    %v245 = vmul.f32 %v243, %v223
    %v246 = vmul.f32 %v243, %v224
    %v247 = vadd.f32 %v239, %v245
    %v248 = vadd.f32 %v240, %v246
    %249 = vrot.lane.b32.xlu0 %v131, 16
    %v250 = vpop.permute.xlu0 %249
    %251 = vrot.lane.b32.xlu0 %v132, 16
    %v252 = vpop.permute.xlu0 %251
    %253 = vrot.lane.b32.xlu0 %v133, 16
    %v254 = vpop.permute.xlu0 %253
    %255 = vrot.lane.b32.xlu0 %v134, 16
    %v256 = vpop.permute.xlu0 %255
    %257 = vrot.lane.b32.xlu0 %v135, 16
    %v258 = vpop.permute.xlu0 %257
    %259 = vrot.lane.b32.xlu0 %v136, 16
    %v260 = vpop.permute.xlu0 %259
    %v261 = vsel %vm149, %v250, %v256
    %v262 = vsel %vm149, %v252, %v258
    %v263 = vsel %vm149, %v254, %v260
    %v264 = vsel %vm149, %v256, %v250
    %v265 = vsel %vm149, %v258, %v252
    %v266 = vsel %vm149, %v260, %v254
    %s267 = scalar_lea.vmem [#allocation6], 2
    %v268 = vld [vmem:[%s267] ss:$8 sm:$0x3]
    %v270 = vperm.slane %v268, 0
    %v271 = vperm.slane %v268, 1
    %v274 = vmul.f32 %v264, %v270
    %v275 = vmul.f32 %v261, %v271
    %v276 = vmul.f32 %v265, %v270
    %v277 = vmul.f32 %v262, %v271
    %v278 = vmul.f32 %v266, %v270
    %v279 = vmul.f32 %v263, %v271
    %280 = vset.pattern.permute.xlu0 6
    %281 = vperm.xlu0 %280, %v168
    %v282 = vpop.permute.xlu0 %281
    %v284 = vmul.f32 %v282, %v274
    %v285 = vmul.f32 %v282, %v275
    %v286 = vadd.f32 %v247, %v284
    %v287 = vadd.f32 %v248, %v285
    %288 = vset.pattern.permute.xlu0 7
    %289 = vperm.xlu0 %288, %v168
    %v290 = vpop.permute.xlu0 %289
    %v292 = vmul.f32 %v290, %v276
    %v293 = vmul.f32 %v290, %v277
    %v294 = vadd.f32 %v286, %v292
    %v295 = vadd.f32 %v287, %v293
    %296 = vset.pattern.permute.xlu0 8
    %297 = vperm.xlu0 %296, %v168
    %v298 = vpop.permute.xlu0 %297
    %v300 = vmul.f32 %v298, %v278
    %v301 = vmul.f32 %v298, %v279
    %v302 = vadd.f32 %v294, %v300
    %v303 = vadd.f32 %v295, %v301
    %s304 = scalar_lea.vmem [#allocation6], 3
    %v305 = vld [vmem:[%s304] ss:$8 sm:$0x3]
    %v307 = vperm.slane %v305, 0
    %v308 = vperm.slane %v305, 1
    %v311 = vmul.f32 %v115, %v307
    %v312 = vmul.f32 %v112, %v308
    %v313 = vmul.f32 %v116, %v307
    %v314 = vmul.f32 %v113, %v308
    %v315 = vmul.f32 %v117, %v307
    %v316 = vmul.f32 %v114, %v308
    %317 = vset.pattern.permute.xlu0 9
    %318 = vperm.xlu0 %317, %v168
    %v319 = vpop.permute.xlu0 %318
    %v321 = vmul.f32 %v319, %v311
    %v322 = vmul.f32 %v319, %v312
    %v323 = vadd.f32 %v302, %v321
    %v324 = vadd.f32 %v303, %v322
    %325 = vset.pattern.permute.xlu0 10
    %326 = vperm.xlu0 %325, %v168
    %v327 = vpop.permute.xlu0 %326
    %v329 = vmul.f32 %v327, %v313
    %v330 = vmul.f32 %v327, %v314
    %v331 = vadd.f32 %v323, %v329
    %v332 = vadd.f32 %v324, %v330
    %333 = vset.pattern.permute.xlu0 11
    %334 = vperm.xlu0 %333, %v168
    %v335 = vpop.permute.xlu0 %334
    %v337 = vmul.f32 %v335, %v315
    %v338 = vmul.f32 %v335, %v316
    %v339 = vadd.f32 %v331, %v337
    %v340 = vadd.f32 %v332, %v338
    %341 = vset.pattern.permute.xlu0 12
    %342 = vperm.xlu0 %341, %v168
    %v343 = vpop.permute.xlu0 %342
    %v345 = vmul.f32 %v343, %v91
    %v346 = vmul.f32 %v343, %v92
    %v347 = vadd.f32 %v339, %v345
    %v348 = vadd.f32 %v340, %v346
    %349 = vset.pattern.permute.xlu0 13
    %350 = vperm.xlu0 %349, %v168
    %v351 = vpop.permute.xlu0 %350
    %v353 = vmul.f32 %v351, %v93
    %v354 = vmul.f32 %v351, %v94
    %v355 = vadd.f32 %v347, %v353
    %v356 = vadd.f32 %v348, %v354
    %357 = vset.pattern.permute.xlu0 14
    %358 = vperm.xlu0 %357, %v168
    %v359 = vpop.permute.xlu0 %358
    %v361 = vmul.f32 %v359, %v95
    %v362 = vmul.f32 %v359, %v96
    %v363 = vadd.f32 %v355, %v361
    %v364 = vadd.f32 %v356, %v362
    %s365 = scalar_lea.vmem [#allocation6], 5
    %v366 = vld [vmem:[%s365] ss:$8 sm:$0x3]
    %v368 = vperm.slane %v366, 0
    %v369 = vperm.slane %v366, 1
    %v372 = vmul.f32 %v131, %v368
    %v373 = vmul.f32 %v134, %v369
    %v374 = vmul.f32 %v132, %v368
    %v375 = vmul.f32 %v135, %v369
    %v376 = vmul.f32 %v133, %v368
    %v377 = vmul.f32 %v136, %v369
    %378 = vset.pattern.permute.xlu0 15
    %379 = vperm.xlu0 %378, %v168
    %v380 = vpop.permute.xlu0 %379
    %v382 = vmul.f32 %v380, %v372
    %v383 = vmul.f32 %v380, %v373
    %v384 = vadd.f32 %v363, %v382
    %v385 = vadd.f32 %v364, %v383
    %386 = vset.pattern.permute.xlu0 16
    %387 = vperm.xlu0 %386, %v168
    %v388 = vpop.permute.xlu0 %387
    %v390 = vmul.f32 %v388, %v374
    %v391 = vmul.f32 %v388, %v375
    %v392 = vadd.f32 %v384, %v390
    %v393 = vadd.f32 %v385, %v391
    %394 = vset.pattern.permute.xlu0 17
    %395 = vperm.xlu0 %394, %v168
    %v396 = vpop.permute.xlu0 %395
    %v398 = vmul.f32 %v396, %v376
    %v399 = vmul.f32 %v396, %v377
    %v400 = vadd.f32 %v392, %v398
    %v401 = vadd.f32 %v393, %v399
    %402 = vrot.lane.b32.xlu0 %v115, 112
    %v403 = vpop.permute.xlu0 %402
    %404 = vrot.lane.b32.xlu0 %v116, 112
    %v405 = vpop.permute.xlu0 %404
    %406 = vrot.lane.b32.xlu0 %v117, 112
    %v407 = vpop.permute.xlu0 %406
    %408 = vrot.lane.b32.xlu0 %v112, 112
    %v409 = vpop.permute.xlu0 %408
    %410 = vrot.lane.b32.xlu0 %v113, 112
    %v411 = vpop.permute.xlu0 %410
    %412 = vrot.lane.b32.xlu0 %v114, 112
    %v413 = vpop.permute.xlu0 %412
    %vm414 = vcmp.lt.s32.totalorder %v110, 112
    %v415 = vsel %vm414, %v403, %v409
    %v416 = vsel %vm414, %v405, %v411
    %v417 = vsel %vm414, %v407, %v413
    %v418 = vsel %vm414, %v409, %v403
    %v419 = vsel %vm414, %v411, %v405
    %v420 = vsel %vm414, %v413, %v407
    %s421 = scalar_lea.vmem [#allocation6], 6
    %v422 = vld [vmem:[%s421] ss:$8 sm:$0x3]
    %v424 = vperm.slane %v422, 0
    %v425 = vperm.slane %v422, 1
    %v428 = vmul.f32 %v415, %v424
    %v429 = vmul.f32 %v418, %v425
    %v430 = vmul.f32 %v416, %v424
    %v431 = vmul.f32 %v419, %v425
    %v432 = vmul.f32 %v417, %v424
    %v433 = vmul.f32 %v420, %v425
    %434 = vset.pattern.permute.xlu0 18
    %435 = vperm.xlu0 %434, %v168
    %v436 = vpop.permute.xlu0 %435
    %v438 = vmul.f32 %v436, %v428
    %v439 = vmul.f32 %v436, %v429
    %v440 = vadd.f32 %v400, %v438
    %v441 = vadd.f32 %v401, %v439
    %442 = vset.pattern.permute.xlu0 19
    %443 = vperm.xlu0 %442, %v168
    %v444 = vpop.permute.xlu0 %443
    %v446 = vmul.f32 %v444, %v430
    %v447 = vmul.f32 %v444, %v431
    %v448 = vadd.f32 %v440, %v446
    %v449 = vadd.f32 %v441, %v447
    %450 = vset.pattern.permute.xlu0 20
    %451 = vperm.xlu0 %450, %v168
    %v452 = vpop.permute.xlu0 %451
    %v454 = vmul.f32 %v452, %v432
    %v455 = vmul.f32 %v452, %v433
    %v456 = vadd.f32 %v448, %v454
    %v457 = vadd.f32 %v449, %v455
    %458 = vrot.lane.b32.xlu0 %v91, 112
    %v459 = vpop.permute.xlu0 %458
    %460 = vrot.lane.b32.xlu0 %v93, 112
    %v461 = vpop.permute.xlu0 %460
    %462 = vrot.lane.b32.xlu0 %v95, 112
    %v463 = vpop.permute.xlu0 %462
    %464 = vrot.lane.b32.xlu0 %v92, 112
    %v465 = vpop.permute.xlu0 %464
    %466 = vrot.lane.b32.xlu0 %v94, 112
    %v467 = vpop.permute.xlu0 %466
    %468 = vrot.lane.b32.xlu0 %v96, 112
    %v469 = vpop.permute.xlu0 %468
    %v470 = vsel %vm414, %v459, %v465
    %v471 = vsel %vm414, %v461, %v467
    %v472 = vsel %vm414, %v463, %v469
    %v473 = vsel %vm414, %v465, %v459
    %v474 = vsel %vm414, %v467, %v461
    %v475 = vsel %vm414, %v469, %v463
    %s476 = scalar_lea.vmem [#allocation6], 7
    %v477 = vld [vmem:[%s476] ss:$8 sm:$0x3]
    %v479 = vperm.slane %v477, 0
    %v480 = vperm.slane %v477, 1
    %v483 = vmul.f32 %v470, %v479
    %v484 = vmul.f32 %v473, %v480
    %v485 = vmul.f32 %v471, %v479
    %v486 = vmul.f32 %v474, %v480
    %v487 = vmul.f32 %v472, %v479
    %v488 = vmul.f32 %v475, %v480
    %489 = vset.pattern.permute.xlu0 21
    %490 = vperm.xlu0 %489, %v168
    %v491 = vpop.permute.xlu0 %490
    %v493 = vmul.f32 %v491, %v483
    %v494 = vmul.f32 %v491, %v484
    %v495 = vadd.f32 %v456, %v493
    %v496 = vadd.f32 %v457, %v494
    %497 = vset.pattern.permute.xlu0 22
    %498 = vperm.xlu0 %497, %v168
    %v499 = vpop.permute.xlu0 %498
    %v501 = vmul.f32 %v499, %v485
    %v502 = vmul.f32 %v499, %v486
    %v503 = vadd.f32 %v495, %v501
    %v504 = vadd.f32 %v496, %v502
    %505 = vset.pattern.permute.xlu0 23
    %506 = vperm.xlu0 %505, %v168
    %v507 = vpop.permute.xlu0 %506
    %v509 = vmul.f32 %v507, %v487
    %v510 = vmul.f32 %v507, %v488
    %v511 = vadd.f32 %v503, %v509
    %v512 = vadd.f32 %v504, %v510
    %513 = vrot.lane.b32.xlu0 %v131, 112
    %v514 = vpop.permute.xlu0 %513
    %515 = vrot.lane.b32.xlu0 %v132, 112
    %v516 = vpop.permute.xlu0 %515
    %517 = vrot.lane.b32.xlu0 %v133, 112
    %v518 = vpop.permute.xlu0 %517
    %519 = vrot.lane.b32.xlu0 %v134, 112
    %v520 = vpop.permute.xlu0 %519
    %521 = vrot.lane.b32.xlu0 %v135, 112
    %v522 = vpop.permute.xlu0 %521
    %523 = vrot.lane.b32.xlu0 %v136, 112
    %v524 = vpop.permute.xlu0 %523
    %v525 = vsel %vm414, %v514, %v520
    %v526 = vsel %vm414, %v516, %v522
    %v527 = vsel %vm414, %v518, %v524
    %v528 = vsel %vm414, %v520, %v514
    %v529 = vsel %vm414, %v522, %v516
    %v530 = vsel %vm414, %v524, %v518
    %s531 = scalar_lea.vmem [#allocation6], 16
    %v532 = vld [vmem:[%s531] ss:$8 sm:$0x3]
    %v534 = vperm.slane %v532, 0
    %v535 = vperm.slane %v532, 1
    %v538 = vmul.f32 %v525, %v534
    %v539 = vmul.f32 %v528, %v535
    %v540 = vmul.f32 %v526, %v534
    %v541 = vmul.f32 %v529, %v535
    %v542 = vmul.f32 %v527, %v534
    %v543 = vmul.f32 %v530, %v535
    %544 = vset.pattern.permute.xlu0 24
    %545 = vperm.xlu0 %544, %v168
    %v546 = vpop.permute.xlu0 %545
    %v548 = vmul.f32 %v546, %v538
    %v549 = vmul.f32 %v546, %v539
    %v550 = vadd.f32 %v511, %v548
    %v551 = vadd.f32 %v512, %v549
    %552 = vset.pattern.permute.xlu0 25
    %553 = vperm.xlu0 %552, %v168
    %v554 = vpop.permute.xlu0 %553
    %v556 = vmul.f32 %v554, %v540
    %v557 = vmul.f32 %v554, %v541
    %v558 = vadd.f32 %v550, %v556
    %v559 = vadd.f32 %v551, %v557
    %560 = vset.pattern.permute.xlu0 26
    %561 = vperm.xlu0 %560, %v168
    %v562 = vpop.permute.xlu0 %561
    %v564 = vmul.f32 %v562, %v542
    %v565 = vmul.f32 %v562, %v543
    %v566 = vadd.f32 %v558, %v564
    %v567 = vadd.f32 %v559, %v565
    %v568 = vlaneseq
    %v569 = vshrl.u32 %v568, 7
    %vm570 = vcmp.ge.s32.totalorder %v569, 0
    %vm571 = vcmp.lt.s32.totalorder %v569, 2
    %vm572 = vmand %vm570, %vm571
    %v573 = vsel %vm572, 1, 0
    %vm574 = vcmp.eq.s32.totalorder %v573, 1
    %v575 = vsel %vm574, %v566, 0.0
    %v576 = vsel %vm574, %v567, 0.0
    %v577 = vadd.f32 %v575, %v576
    %578 = vadd.xlane.f32.xlu0 %v577
    %v579 = vpop.xlane.xlu0 %578
    %v580 = vrot.slane %v579, 4
    %v581 = vadd.f32 %v579, %v580
    %v582 = vrot.slane %v581, 2
    %v583 = vadd.f32 %v581, %v582
    %v584 = vrot.slane %v583, 1
    %v585 = vadd.f32 %v583, %v584
    %v586 = vmul.f32 %v585, 0.001953125
    %v587 = vsub.f32 %v566, %v586
    %v588 = vsub.f32 %v567, %v586
    %v589 = vsel %vm574, %v587, 0.0
    %v590 = vsel %vm574, %v588, 0.0
    %v591 = vmul.f32 %v589, %v589
    %v592 = vmul.f32 %v590, %v590
    %v593 = vadd.f32 %v591, %v592
    %594 = vadd.xlane.f32.xlu0 %v593
    %v595 = vpop.xlane.xlu0 %594
    %v596 = vrot.slane %v595, 4
    %v597 = vadd.f32 %v595, %v596
    %v598 = vrot.slane %v597, 2
    %v599 = vadd.f32 %v597, %v598
    %v600 = vrot.slane %v599, 1
    %v601 = vadd.f32 %v599, %v600
    %v602 = vmul.f32 %v601, 0.001953125
    %v603 = vadd.f32 %v602, 1e-05
    %v604 = vrsqrt.pop %v603
    %v605 = vmul.f32 %v604, %v603
    %v606 = vmul.f32 %v605, %v604
    %v607 = vmul.f32 0.5, %v606
    %v608 = vsub.f32 1.5, %v607
    %v609 = vmul.f32 %v604, %v608
    %vm610 = vweird.f32 %v603
    %vm611 = vweird.f32 %v604
    %vm612 = vmor %vm610, %vm611
    %v613 = vsel %vm612, %v604, %v609
    %s614 = sld [smem:[#allocation9]]
    %v615 = vstv %s614
    %v616 = vmul.f32 %v613, %v615
    %s617 = sld [smem:[#allocation10]]
    %v618 = vmul.f32 %v586, %v616
    %v619 = vstv %s617
    %v620 = vsub.f32 %v619, %v618
    %v621 = vsel %vm572, %v616, 0.0
    %v622 = vsel %vm572, %v620, 0.0
    %vm623 = vcmp.ge.s32.totalorder %v569, 2
    %vm624 = vcmp.lt.s32.totalorder %v569, 4
    %vm625 = vmand %vm623, %vm624
    %v626 = vsel %vm625, 1, 0
    %vm627 = vcmp.eq.s32.totalorder %v626, 1
    %v628 = vsel %vm627, %v566, 0.0
    %v629 = vsel %vm627, %v567, 0.0
    %v630 = vadd.f32 %v628, %v629
    %631 = vadd.xlane.f32.xlu0 %v630
    %v632 = vpop.xlane.xlu0 %631
    %v633 = vrot.slane %v632, 4
    %v634 = vadd.f32 %v632, %v633
    %v635 = vrot.slane %v634, 2
    %v636 = vadd.f32 %v634, %v635
    %v637 = vrot.slane %v636, 1
    %v638 = vadd.f32 %v636, %v637
    %v639 = vmul.f32 %v638, 0.001953125
    %v640 = vsub.f32 %v566, %v639
    %v641 = vsub.f32 %v567, %v639
    %v642 = vsel %vm627, %v640, 0.0
    %v643 = vsel %vm627, %v641, 0.0
    %v644 = vmul.f32 %v642, %v642
    %v645 = vmul.f32 %v643, %v643
    %v646 = vadd.f32 %v644, %v645
    %647 = vadd.xlane.f32.xlu0 %v646
    %v648 = vpop.xlane.xlu0 %647
    %v649 = vrot.slane %v648, 4
    %v650 = vadd.f32 %v648, %v649
    %v651 = vrot.slane %v650, 2
    %v652 = vadd.f32 %v650, %v651
    %v653 = vrot.slane %v652, 1
    %v654 = vadd.f32 %v652, %v653
    %v655 = vmul.f32 %v654, 0.001953125
    %v656 = vadd.f32 %v655, 1e-05
    %v657 = vrsqrt.pop %v656
    %v658 = vmul.f32 %v657, %v656
    %v659 = vmul.f32 %v658, %v657
    %v660 = vmul.f32 0.5, %v659
    %v661 = vsub.f32 1.5, %v660
    %v662 = vmul.f32 %v657, %v661
    %vm663 = vweird.f32 %v656
    %vm664 = vweird.f32 %v657
    %vm665 = vmor %vm663, %vm664
    %v666 = vsel %vm665, %v657, %v662
    %s667 = sld [smem:[#allocation9 + $0x1]]
    %v668 = vstv %s667
    %v669 = vmul.f32 %v666, %v668
    %s670 = sld [smem:[#allocation10 + $0x1]]
    %v671 = vmul.f32 %v639, %v669
    %v672 = vstv %s670
    %v673 = vsub.f32 %v672, %v671
    %v674 = vsel %vm625, %v669, %v621
    %v675 = vsel %vm625, %v673, %v622
    %vm676 = vcmp.ge.s32.totalorder %v569, 4
    %vm677 = vcmp.lt.s32.totalorder %v569, 6
    %vm678 = vmand %vm676, %vm677
    %v679 = vsel %vm678, 1, 0
    %vm680 = vcmp.eq.s32.totalorder %v679, 1
    %v681 = vsel %vm680, %v566, 0.0
    %v682 = vsel %vm680, %v567, 0.0
    %v683 = vadd.f32 %v681, %v682
    %684 = vadd.xlane.f32.xlu0 %v683
    %v685 = vpop.xlane.xlu0 %684
    %v686 = vrot.slane %v685, 4
    %v687 = vadd.f32 %v685, %v686
    %v688 = vrot.slane %v687, 2
    %v689 = vadd.f32 %v687, %v688
    %v690 = vrot.slane %v689, 1
    %v691 = vadd.f32 %v689, %v690
    %v692 = vmul.f32 %v691, 0.001953125
    %v693 = vsub.f32 %v566, %v692
    %v694 = vsub.f32 %v567, %v692
    %v695 = vsel %vm680, %v693, 0.0
    %v696 = vsel %vm680, %v694, 0.0
    %v697 = vmul.f32 %v695, %v695
    %v698 = vmul.f32 %v696, %v696
    %v699 = vadd.f32 %v697, %v698
    %700 = vadd.xlane.f32.xlu0 %v699
    %v701 = vpop.xlane.xlu0 %700
    %v702 = vrot.slane %v701, 4
    %v703 = vadd.f32 %v701, %v702
    %v704 = vrot.slane %v703, 2
    %v705 = vadd.f32 %v703, %v704
    %v706 = vrot.slane %v705, 1
    %v707 = vadd.f32 %v705, %v706
    %v708 = vmul.f32 %v707, 0.001953125
    %v709 = vadd.f32 %v708, 1e-05
    %v710 = vrsqrt.pop %v709
    %v711 = vmul.f32 %v710, %v709
    %v712 = vmul.f32 %v711, %v710
    %v713 = vmul.f32 0.5, %v712
    %v714 = vsub.f32 1.5, %v713
    %v715 = vmul.f32 %v710, %v714
    %vm716 = vweird.f32 %v709
    %vm717 = vweird.f32 %v710
    %vm718 = vmor %vm716, %vm717
    %v719 = vsel %vm718, %v710, %v715
    %s720 = sld [smem:[#allocation9 + $0x2]]
    %v721 = vstv %s720
    %v722 = vmul.f32 %v719, %v721
    %s723 = sld [smem:[#allocation10 + $0x2]]
    %v724 = vmul.f32 %v692, %v722
    %v725 = vstv %s723
    %v726 = vsub.f32 %v725, %v724
    %v727 = vsel %vm678, %v722, %v674
    %v728 = vsel %vm678, %v726, %v675
    %v729 = vmul.f32 %v566, %v727
    %v730 = vmul.f32 %v567, %v727
    %v731 = vadd.f32 %v729, %v728
    %v732 = vadd.f32 %v730, %v728
    %v733 = vmax.f32 %v731, 0.0
    %v734 = vmax.f32 %v732, 0.0
    %735 = vst [vmem:[#allocation12] sm:$0xff] %v733
    %736 = vst [vmem:[#allocation12 + $0x8] sm:$0xff] %v734
    // Predicated region
    $region42: #{tpu_custom_call.1} parent=1 // pred_check
      _
    $region43: #{tpu_custom_call.1} parent=1 // pred_check_branch
      %738 = sbr.rel (0) target = $region45
    $region44: #{tpu_custom_call.1} parent=1 // pred_region
      %740 = vsyncadd [#allocation4], 0
      %s742 = sshll.u32 [#allocation12], 4
      %s743 = int_to_ptr.vmem [resolvable:$true] %s742
      %s744 = sshll.u32 %s5, 4
      %s745 = int_to_ptr.hbm [resolvable:$true] %s744
      %747 = dma.vmem_to_hbm [thread:$0]  %s743, 256, %s745, [#allocation4]
    $region45: #{tpu_custom_call.1} parent=1 // pred_fallthru
      _
    // Predicated region
    $region46: #{tpu_custom_call.1} parent=1 // pred_check
      _
    $region47: #{tpu_custom_call.1} parent=1 // pred_check_branch
      %749 = sbr.rel (0) target = $region49
    $region48: #{tpu_custom_call.1} parent=1 // pred_region
      %751 = dma.done [#allocation4], 256
    $region49: #{tpu_custom_call.1} parent=1 // pred_fallthru
      _
    %752 = vsyncpa [#allocation3], 1
    %753 = vsyncpa [#allocation7], 1
    %754 = vsyncpa [#allocation4], 1
    %755 = vsyncpa [#allocation5], 1
    %756 = vsyncpa [#allocation11], 1

</llo_original>
